<compile_context>
chip_gen: v7x
topology: tpu7x:2x2x1
jax: 0.10.0
libtpu: 0.0.40
codegen_flags: <defaults>
</compile_context>

<pallas_src>
import functools

import jax
import jax.numpy as jnp
from jax.experimental import pallas as pl
from jax.experimental.pallas import tpu as pltpu


# ------------------------------ Pallas kernel ------------------------------ #

def _make_decoder_kernel(n_layers, hid_dim):
    """Build the fused decoder kernel for a static layer count."""
    H = hid_dim

    def kernel(*refs):
        # inputs : ids, emb, h_in, c_in, (w_l, b_l) * n_layers, w_out, b_out
        # outputs: pred, h_out, c_out
        ids_ref, emb_ref, h_in_ref, c_in_ref = refs[:4]
        layer_refs = refs[4:4 + 2 * n_layers]
        w_out_ref = refs[4 + 2 * n_layers]
        b_out_ref = refs[5 + 2 * n_layers]
        pred_ref, h_out_ref, c_out_ref = refs[6 + 2 * n_layers:]

        B = ids_ref.shape[0]
        Vp = emb_ref.shape[0]          # vocab padded to a multiple of 128

        # Embedding gather as a one-hot MXU matmul (table is tiny, VMEM-resident).
        ids = ids_ref[...]                                          # [B, 1] int32
        onehot = (jax.lax.broadcasted_iota(jnp.int32, (B, Vp), 1)
                  == ids).astype(jnp.float32)                       # [B, Vp]
        x = jnp.dot(onehot, emb_ref[...],
                    preferred_element_type=jnp.float32)             # [B, E]
        # nn.Dropout is identity in eval mode.

        for l in range(n_layers):
            w_ref = layer_refs[2 * l]        # [in_dim + H, 4H]  == [W_ih ; W_hh]^T
            b_ref = layer_refs[2 * l + 1]    # [1, 4H]           == b_ih + b_hh
            h = h_in_ref[l]                  # [B, H]
            c = c_in_ref[l]                  # [B, H]

            xh = jnp.concatenate([x, h], axis=-1)                   # [B, in_dim+H]
            gates = (jnp.dot(xh, w_ref[...],
                             preferred_element_type=jnp.float32)
                     + b_ref[...])                                  # [B, 4H]

            # Two full-width transcendental passes, then slice (i, f, g, o).
            sig = jax.nn.sigmoid(gates)
            tnh = jnp.tanh(gates)
            i_g = sig[:, 0 * H:1 * H]
            f_g = sig[:, 1 * H:2 * H]
            g_g = tnh[:, 2 * H:3 * H]
            o_g = sig[:, 3 * H:4 * H]

            c_new = f_g * c + i_g * g_g
            h_new = o_g * jnp.tanh(c_new)

            h_out_ref[l] = h_new
            c_out_ref[l] = c_new
            x = h_new                        # inter-layer dropout: identity (eval)

        # Lane-dense output projection (Vp is a multiple of 128).
        pred_ref[...] = (jnp.dot(x, w_out_ref[...],
                                 preferred_element_type=jnp.float32)
                         + b_out_ref[...])

    return kernel


# ------------------------------ Wrappers ----------------------------------- #

_VMEM = pl.BlockSpec(memory_space=pltpu.MemorySpace.VMEM)


def pack_params(p, *, lane=128):
    """Convert PyTorch-layout Decoder params into the fused-kernel layout."""
    V, E = p["embedding"].shape
    n_layers = len(p["w_ih"])
    H = p["w_hh"][0].shape[1]
    Vp = ((V + lane - 1) // lane) * lane

    packed = {
        # pad vocab rows so the in-kernel one-hot matmul has a 128-aligned K
        "embedding": jnp.pad(p["embedding"], ((0, Vp - V), (0, 0))),
        "w": [], "b": [],
        # output projection stored transposed + lane-padded: [H, Vp]
        "w_out": jnp.pad(p["w_out"].T, ((0, 0), (0, Vp - V))),
        "b_out": jnp.pad(p["b_out"].reshape(1, V), ((0, 0), (0, Vp - V))),
    }
    for l in range(n_layers):
        # [W_ih ; W_hh] stacked along the input dim, transposed: [in_dim + H, 4H]
        packed["w"].append(
            jnp.concatenate([p["w_ih"][l], p["w_hh"][l]], axis=1).T)
        packed["b"].append((p["b_ih"][l] + p["b_hh"][l]).reshape(1, 4 * H))
    return packed


@functools.partial(jax.jit, static_argnames=("vocab_size",))
def decoder_forward(input_ids, hidden, cell, packed, *, vocab_size):
    """Mirror of Decoder.forward (eval mode) as one fused Pallas call.

    input_ids: [B] int32, hidden/cell: [L, B, H] f32.
    Returns (prediction [B, V], hidden [L, B, H], cell [L, B, H]).
    """
    L, _, H = hidden.shape
    B = input_ids.shape[0]
    n_layers = len(packed["w"])
    Vp = packed["w_out"].shape[1]

    ids_2d = input_ids.reshape(B, 1).astype(jnp.int32)

    inputs = [ids_2d, packed["embedding"], hidden, cell]
    for l in range(n_layers):
        inputs.append(packed["w"][l])
        inputs.append(packed["b"][l])
    inputs.append(packed["w_out"])
    inputs.append(packed["b_out"])

    pred_pad, h_out, c_out = pl.pallas_call(
        _make_decoder_kernel(n_layers, H),
        out_shape=(jax.ShapeDtypeStruct((B, Vp), jnp.float32),
                   jax.ShapeDtypeStruct((L, B, H), jnp.float32),
                   jax.ShapeDtypeStruct((L, B, H), jnp.float32)),
        in_specs=[_VMEM] * len(inputs),
        out_specs=(_VMEM, _VMEM, _VMEM),
    )(*inputs)

    # TODO(synk): for a full autoregressive decode loop, move the time loop into
    # the kernel (or keep weights VMEM-resident across calls) instead of
    # re-DMAing ~100 KB of weights every token.
    return pred_pad[:, :vocab_size], h_out, c_out


# ----------------------------- Reference (pure JAX) ------------------------ #

def decoder_forward_ref(input_ids, hidden, cell, p):
    """Pure-JAX reference straight from the PyTorch-layout parameters."""
    n_layers = len(p["w_ih"])
    H = hidden.shape[-1]
    x = p["embedding"][input_ids]
    new_h, new_c = [], []
    for l in range(n_layers):
        gates = (x @ p["w_ih"][l].T + hidden[l] @ p["w_hh"][l].T
                 + p["b_ih"][l] + p["b_hh"][l])
        i_g = jax.nn.sigmoid(gates[:, 0 * H:1 * H])
        f_g = jax.nn.sigmoid(gates[:, 1 * H:2 * H])
        g_g = jnp.tanh(gates[:, 2 * H:3 * H])
        o_g = jax.nn.sigmoid(gates[:, 3 * H:4 * H])
        c_new = f_g * cell[l] + i_g * g_g
        h_new = o_g * jnp.tanh(c_new)
        new_h.append(h_new)
        new_c.append(c_new)
        x = h_new
    pred = x @ p["w_out"].T + p["b_out"]
    return pred, jnp.stack(new_h), jnp.stack(new_c)


# --------------------------------- Main ------------------------------------ #

if __name__ == "__main__":
    output_dim = 50   # vocab size
    emb_dim = 32
    hid_dim = 32
    n_layers = 2
    batch = 8

    key = jax.random.PRNGKey(0)
    keys = jax.random.split(key, 20)

    def init(k, shape, scale=0.1):
        return (scale * jax.random.normal(k, shape)).astype(jnp.float32)

    # PyTorch-layout parameters (nn.Embedding / nn.LSTM / nn.Linear).
    torch_params = {
        "embedding": init(keys[0], (output_dim, emb_dim)),
        "w_ih": [], "w_hh": [], "b_ih": [], "b_hh": [],
        "w_out": init(keys[1], (output_dim, hid_dim)),
        "b_out": init(keys[2], (output_dim,)),
    }
    kk = 3
    for l in range(n_layers):
        in_dim = emb_dim if l == 0 else hid_dim
        torch_params["w_ih"].append(init(keys[kk], (4 * hid_dim, in_dim))); kk += 1
        torch_params["w_hh"].append(init(keys[kk], (4 * hid_dim, hid_dim))); kk += 1
        torch_params["b_ih"].append(init(keys[kk], (4 * hid_dim,))); kk += 1
        torch_params["b_hh"].append(init(keys[kk], (4 * hid_dim,))); kk += 1

    packed = pack_params(torch_params)

    input_ids = jax.random.randint(keys[15], (batch,), 0, output_dim,
                                   dtype=jnp.int32)
    hidden = init(keys[16], (n_layers, batch, hid_dim), scale=0.5)
    cell = init(keys[17], (n_layers, batch, hid_dim), scale=0.5)

    pred, h_out, c_out = decoder_forward(input_ids, hidden, cell, packed,
                                         vocab_size=output_dim)
    jax.block_until_ready((pred, h_out, c_out))

    pred_r, h_r, c_r = decoder_forward_ref(input_ids, hidden, cell, torch_params)
    assert pred.shape == (batch, output_dim)
    assert h_out.shape == (n_layers, batch, hid_dim)
    assert c_out.shape == (n_layers, batch, hid_dim)
    assert jnp.allclose(pred, pred_r, atol=1e-4), "prediction mismatch"
    assert jnp.allclose(h_out, h_r, atol=1e-4), "hidden mismatch"
    assert jnp.allclose(c_out, c_r, atol=1e-4), "cell mismatch"

    print("KERNEL_OK")
</pallas_src>

<mosaic_0001>
module attributes {stable_mosaic.version = 11 : i64} {
  func.func @kernel(%arg0: memref<8x1xi32, #tpu.memory_space<vmem>>, %arg1: memref<128x32xf32, #tpu.memory_space<vmem>>, %arg2: memref<2x8x32xf32, #tpu.memory_space<vmem>>, %arg3: memref<2x8x32xf32, #tpu.memory_space<vmem>>, %arg4: memref<64x128xf32, #tpu.memory_space<vmem>>, %arg5: memref<1x128xf32, #tpu.memory_space<vmem>>, %arg6: memref<64x128xf32, #tpu.memory_space<vmem>>, %arg7: memref<1x128xf32, #tpu.memory_space<vmem>>, %arg8: memref<32x128xf32, #tpu.memory_space<vmem>>, %arg9: memref<1x128xf32, #tpu.memory_space<vmem>>, %arg10: memref<8x128xf32, #tpu.memory_space<vmem>>, %arg11: memref<2x8x32xf32, #tpu.memory_space<vmem>>, %arg12: memref<2x8x32xf32, #tpu.memory_space<vmem>>) attributes {dimension_semantics = [], scalar_prefetch = 0 : i64, scratch_operands = 0 : i64, tpu.core_type = #tpu.core_type<tc>} {
    %c0 = arith.constant 0 : index
    %c0_0 = arith.constant 0 : index
    %0 = vector.load %arg0[%c0, %c0_0] : memref<8x1xi32, #tpu.memory_space<vmem>>, vector<8x1xi32>
    %1 = tpu.iota {dimensions = array<i32: 1>} : vector<8x128xi32>
    %2 = vector.broadcast %0 : vector<8x1xi32> to vector<8x128xi32>
    %3 = arith.cmpi eq, %1, %2 : vector<8x128xi32>
    %4 = arith.extui %3 : vector<8x128xi1> to vector<8x128xi32>
    %5 = arith.sitofp %4 : vector<8x128xi32> to vector<8x128xf32>
    %c0_1 = arith.constant 0 : index
    %c0_2 = arith.constant 0 : index
    %6 = vector.load %arg1[%c0_1, %c0_2] : memref<128x32xf32, #tpu.memory_space<vmem>>, vector<128x32xf32>
    %cst = arith.constant dense<0.000000e+00> : vector<8x32xf32>
    %7 = tpu.matmul %5, %6, %cst {dimension_numbers = #tpu.dot_dimension_numbers<[1], [0], [0], [1], [0, 0, 1, 1], [], []>} : vector<8x128xf32>, vector<128x32xf32>, vector<8x32xf32> -> vector<8x32xf32>
    %c0_3 = arith.constant 0 : index
    %c0_4 = arith.constant 0 : index
    %c0_5 = arith.constant 0 : index
    %8 = vector.load %arg2[%c0_3, %c0_4, %c0_5] : memref<2x8x32xf32, #tpu.memory_space<vmem>>, vector<1x8x32xf32>
    %9 = vector.shape_cast %8 : vector<1x8x32xf32> to vector<8x32xf32>
    %c0_6 = arith.constant 0 : index
    %c0_7 = arith.constant 0 : index
    %c0_8 = arith.constant 0 : index
    %10 = vector.load %arg3[%c0_6, %c0_7, %c0_8] : memref<2x8x32xf32, #tpu.memory_space<vmem>>, vector<1x8x32xf32>
    %11 = vector.shape_cast %10 : vector<1x8x32xf32> to vector<8x32xf32>
    %12 = tpu.concatenate %7, %9 in 1 : vector<8x32xf32>, vector<8x32xf32> -> vector<8x64xf32>
    %c0_9 = arith.constant 0 : index
    %c0_10 = arith.constant 0 : index
    %13 = vector.load %arg4[%c0_9, %c0_10] : memref<64x128xf32, #tpu.memory_space<vmem>>, vector<64x128xf32>
    %cst_11 = arith.constant dense<0.000000e+00> : vector<8x128xf32>
    %14 = tpu.matmul %12, %13, %cst_11 {dimension_numbers = #tpu.dot_dimension_numbers<[1], [0], [0], [1], [0, 0, 1, 1], [], []>} : vector<8x64xf32>, vector<64x128xf32>, vector<8x128xf32> -> vector<8x128xf32>
    %c0_12 = arith.constant 0 : index
    %c0_13 = arith.constant 0 : index
    %15 = vector.load %arg5[%c0_12, %c0_13] : memref<1x128xf32, #tpu.memory_space<vmem>>, vector<1x128xf32>
    %16 = vector.broadcast %15 : vector<1x128xf32> to vector<8x128xf32>
    %17 = arith.addf %14, %16 : vector<8x128xf32>
    %18 = arith.negf %17 : vector<8x128xf32>
    %19 = math.exp %18 : vector<8x128xf32>
    %cst_14 = arith.constant 1.000000e+00 : f32
    %20 = vector.broadcast %cst_14 : f32 to vector<8x128xf32>
    %21 = arith.addf %20, %19 : vector<8x128xf32>
    %22 = arith.divf %20, %21 : vector<8x128xf32>
    %23 = math.tanh %17 : vector<8x128xf32>
    %24 = vector.extract_strided_slice %22 {offsets = [0, 0], sizes = [8, 32], strides = [1, 1]} : vector<8x128xf32> to vector<8x32xf32>
    %25 = vector.extract_strided_slice %22 {offsets = [0, 32], sizes = [8, 32], strides = [1, 1]} : vector<8x128xf32> to vector<8x32xf32>
    %26 = vector.extract_strided_slice %23 {offsets = [0, 64], sizes = [8, 32], strides = [1, 1]} : vector<8x128xf32> to vector<8x32xf32>
    %27 = vector.extract_strided_slice %22 {offsets = [0, 96], sizes = [8, 32], strides = [1, 1]} : vector<8x128xf32> to vector<8x32xf32>
    %28 = arith.mulf %25, %11 : vector<8x32xf32>
    %29 = arith.mulf %24, %26 : vector<8x32xf32>
    %30 = arith.addf %28, %29 : vector<8x32xf32>
    %31 = math.tanh %30 : vector<8x32xf32>
    %32 = arith.mulf %27, %31 : vector<8x32xf32>
    %c0_15 = arith.constant 0 : index
    %c0_16 = arith.constant 0 : index
    %c0_17 = arith.constant 0 : index
    %33 = vector.load %arg11[%c0_15, %c0_16, %c0_17] : memref<2x8x32xf32, #tpu.memory_space<vmem>>, vector<1x8x32xf32>
    %34 = vector.shape_cast %33 : vector<1x8x32xf32> to vector<8x32xf32>
    %35 = vector.shape_cast %32 : vector<8x32xf32> to vector<1x8x32xf32>
    tpu.vector_store %arg11[%c0_15, %c0_16, %c0_17], %35 {strides = array<i32>} : memref<2x8x32xf32, #tpu.memory_space<vmem>>, vector<1x8x32xf32>,
    %c0_18 = arith.constant 0 : index
    %c0_19 = arith.constant 0 : index
    %c0_20 = arith.constant 0 : index
    %36 = vector.load %arg12[%c0_18, %c0_19, %c0_20] : memref<2x8x32xf32, #tpu.memory_space<vmem>>, vector<1x8x32xf32>
    %37 = vector.shape_cast %36 : vector<1x8x32xf32> to vector<8x32xf32>
    %38 = vector.shape_cast %30 : vector<8x32xf32> to vector<1x8x32xf32>
    tpu.vector_store %arg12[%c0_18, %c0_19, %c0_20], %38 {strides = array<i32>} : memref<2x8x32xf32, #tpu.memory_space<vmem>>, vector<1x8x32xf32>,
    %c1 = arith.constant 1 : index
    %c0_21 = arith.constant 0 : index
    %c0_22 = arith.constant 0 : index
    %39 = vector.load %arg2[%c1, %c0_21, %c0_22] : memref<2x8x32xf32, #tpu.memory_space<vmem>>, vector<1x8x32xf32>
    %40 = vector.shape_cast %39 : vector<1x8x32xf32> to vector<8x32xf32>
    %c1_23 = arith.constant 1 : index
    %c0_24 = arith.constant 0 : index
    %c0_25 = arith.constant 0 : index
    %41 = vector.load %arg3[%c1_23, %c0_24, %c0_25] : memref<2x8x32xf32, #tpu.memory_space<vmem>>, vector<1x8x32xf32>
    %42 = vector.shape_cast %41 : vector<1x8x32xf32> to vector<8x32xf32>
    %43 = tpu.concatenate %32, %40 in 1 : vector<8x32xf32>, vector<8x32xf32> -> vector<8x64xf32>
    %c0_26 = arith.constant 0 : index
    %c0_27 = arith.constant 0 : index
    %44 = vector.load %arg6[%c0_26, %c0_27] : memref<64x128xf32, #tpu.memory_space<vmem>>, vector<64x128xf32>
    %cst_28 = arith.constant dense<0.000000e+00> : vector<8x128xf32>
    %45 = tpu.matmul %43, %44, %cst_28 {dimension_numbers = #tpu.dot_dimension_numbers<[1], [0], [0], [1], [0, 0, 1, 1], [], []>} : vector<8x64xf32>, vector<64x128xf32>, vector<8x128xf32> -> vector<8x128xf32>
    %c0_29 = arith.constant 0 : index
    %c0_30 = arith.constant 0 : index
    %46 = vector.load %arg7[%c0_29, %c0_30] : memref<1x128xf32, #tpu.memory_space<vmem>>, vector<1x128xf32>
    %47 = vector.broadcast %46 : vector<1x128xf32> to vector<8x128xf32>
    %48 = arith.addf %45, %47 : vector<8x128xf32>
    %49 = arith.negf %48 : vector<8x128xf32>
    %50 = math.exp %49 : vector<8x128xf32>
    %cst_31 = arith.constant 1.000000e+00 : f32
    %51 = vector.broadcast %cst_31 : f32 to vector<8x128xf32>
    %52 = arith.addf %51, %50 : vector<8x128xf32>
    %53 = arith.divf %51, %52 : vector<8x128xf32>
    %54 = math.tanh %48 : vector<8x128xf32>
    %55 = vector.extract_strided_slice %53 {offsets = [0, 0], sizes = [8, 32], strides = [1, 1]} : vector<8x128xf32> to vector<8x32xf32>
    %56 = vector.extract_strided_slice %53 {offsets = [0, 32], sizes = [8, 32], strides = [1, 1]} : vector<8x128xf32> to vector<8x32xf32>
    %57 = vector.extract_strided_slice %54 {offsets = [0, 64], sizes = [8, 32], strides = [1, 1]} : vector<8x128xf32> to vector<8x32xf32>
    %58 = vector.extract_strided_slice %53 {offsets = [0, 96], sizes = [8, 32], strides = [1, 1]} : vector<8x128xf32> to vector<8x32xf32>
    %59 = arith.mulf %56, %42 : vector<8x32xf32>
    %60 = arith.mulf %55, %57 : vector<8x32xf32>
    %61 = arith.addf %59, %60 : vector<8x32xf32>
    %62 = math.tanh %61 : vector<8x32xf32>
    %63 = arith.mulf %58, %62 : vector<8x32xf32>
    %c1_32 = arith.constant 1 : index
    %c0_33 = arith.constant 0 : index
    %c0_34 = arith.constant 0 : index
    %64 = vector.load %arg11[%c1_32, %c0_33, %c0_34] : memref<2x8x32xf32, #tpu.memory_space<vmem>>, vector<1x8x32xf32>
    %65 = vector.shape_cast %64 : vector<1x8x32xf32> to vector<8x32xf32>
    %66 = vector.shape_cast %63 : vector<8x32xf32> to vector<1x8x32xf32>
    tpu.vector_store %arg11[%c1_32, %c0_33, %c0_34], %66 {strides = array<i32>} : memref<2x8x32xf32, #tpu.memory_space<vmem>>, vector<1x8x32xf32>,
    %c1_35 = arith.constant 1 : index
    %c0_36 = arith.constant 0 : index
    %c0_37 = arith.constant 0 : index
    %67 = vector.load %arg12[%c1_35, %c0_36, %c0_37] : memref<2x8x32xf32, #tpu.memory_space<vmem>>, vector<1x8x32xf32>
    %68 = vector.shape_cast %67 : vector<1x8x32xf32> to vector<8x32xf32>
    %69 = vector.shape_cast %61 : vector<8x32xf32> to vector<1x8x32xf32>
    tpu.vector_store %arg12[%c1_35, %c0_36, %c0_37], %69 {strides = array<i32>} : memref<2x8x32xf32, #tpu.memory_space<vmem>>, vector<1x8x32xf32>,
    %c0_38 = arith.constant 0 : index
    %c0_39 = arith.constant 0 : index
    %70 = vector.load %arg8[%c0_38, %c0_39] : memref<32x128xf32, #tpu.memory_space<vmem>>, vector<32x128xf32>
    %cst_40 = arith.constant dense<0.000000e+00> : vector<8x128xf32>
    %71 = tpu.matmul %63, %70, %cst_40 {dimension_numbers = #tpu.dot_dimension_numbers<[1], [0], [0], [1], [0, 0, 1, 1], [], []>} : vector<8x32xf32>, vector<32x128xf32>, vector<8x128xf32> -> vector<8x128xf32>
    %c0_41 = arith.constant 0 : index
    %c0_42 = arith.constant 0 : index
    %72 = vector.load %arg9[%c0_41, %c0_42] : memref<1x128xf32, #tpu.memory_space<vmem>>, vector<1x128xf32>
    %73 = vector.broadcast %72 : vector<1x128xf32> to vector<8x128xf32>
    %74 = arith.addf %71, %73 : vector<8x128xf32>
    %c0_43 = arith.constant 0 : index
    %c0_44 = arith.constant 0 : index
    %75 = vector.load %arg10[%c0_43, %c0_44] : memref<8x128xf32, #tpu.memory_space<vmem>>, vector<8x128xf32>
    tpu.vector_store %arg10[%c0_43, %c0_44], %74 {strides = array<i32>} : memref<8x128xf32, #tpu.memory_space<vmem>>, vector<8x128xf32>,
    return
  }
}

</mosaic_0001>

<llo_original>
// kernel: decoder_forward.1
$region0: #{decoder_forward.1}
  #allocation0 [shape = 'u32[]', space=smem, size = 0x4, offset = 0x4, fixed_abs, tag = 'smem constant byte address 0x4 - core index']
  #allocation1 [shape = 'u32[144,128]{1,0:T(1,128)}', space=vmem, size = 0x12000, scoped, tag = 'internal scratch']
  %s0 = inlined_call_operand.vmem [shape: s32[8,1], index: 0, kind: input, shape index: {}]
  %s1 = inlined_call_operand.vmem [shape: f32[128,32], index: 1, kind: input, shape index: {}]
  %s2 = inlined_call_operand.hbm [shape: f32[2,8,32], index: 2, kind: input, shape index: {}]
  %s3 = inlined_call_operand.hbm [shape: f32[2,8,32], index: 3, kind: input, shape index: {}]
  %s4 = inlined_call_operand.vmem [shape: f32[64,128], index: 4, kind: input, shape index: {}]
  %s5 = inlined_call_operand.vmem [shape: f32[1,128], index: 5, kind: input, shape index: {}]
  %s6 = inlined_call_operand.vmem [shape: f32[64,128], index: 6, kind: input, shape index: {}]
  %s7 = inlined_call_operand.vmem [shape: f32[1,128], index: 7, kind: input, shape index: {}]
  %s8 = inlined_call_operand.vmem [shape: f32[32,128], index: 8, kind: input, shape index: {}]
  %s9 = inlined_call_operand.vmem [shape: f32[1,128], index: 9, kind: input, shape index: {}]
  %s10 = inlined_call_operand.hbm [shape: f32[8,128], index: 10, kind: output, shape index: {0}]
  %s11 = inlined_call_operand.hbm [shape: f32[2,8,32], index: 11, kind: output, shape index: {1}]
  %s12 = inlined_call_operand.hbm [shape: f32[2,8,32], index: 12, kind: output, shape index: {2}]
  %13 = xla_tuple %s10, %s11, %s12
  %s14 = sld [smem:[#allocation0]]
  $region74: #{decoder_forward.1} parent=0
    _
  %s16 = ssub.s32 1, %s14
  %s17 = scalar_select 0, %s16, %s14
  $region1: #{decoder_forward.1} parent=0
    #allocation2 [shape = 'u8[8192]{0}', space=vmem, size = 0x2000, scoped, tag = 'input window, operand 2, single buffered']
    #allocation3 [shape = 's32[1]{0}', space=sflag, size = 0x4, scoped, tag = 'scoped memory for decoder_forward.1']
    #allocation4 [shape = 's32[1]{0}', space=sflag, size = 0x4, scoped, tag = 'scoped memory for decoder_forward.1']
    #allocation5 [shape = 'u8[8192]{0}', space=vmem, size = 0x2000, scoped, tag = 'input window, operand 3, single buffered']
    #allocation6 [shape = 's32[1]{0}', space=sflag, size = 0x4, scoped, tag = 'scoped memory for decoder_forward.1']
    #allocation7 [shape = 'u8[4096]{0}', space=vmem, size = 0x1000, scoped, tag = 'output window, operand 0, single buffered']
    #allocation8 [shape = 'u8[8192]{0}', space=vmem, size = 0x2000, scoped, tag = 'output window, operand 1, single buffered']
    #allocation9 [shape = 's32[1]{0}', space=sflag, size = 0x4, scoped, tag = 'scoped memory for decoder_forward.1']
    #allocation10 [shape = 'u8[8192]{0}', space=vmem, size = 0x2000, scoped, tag = 'output window, operand 2, single buffered']
    %18 = vsyncpa [#allocation3], 0
    %19 = vsyncpa [#allocation6], 0
    %20 = vsyncpa [#allocation4], 0
    %21 = vsyncpa [#allocation9], 0
    // Predicated region
    $region2: #{decoder_forward.1} parent=1 // pred_check
      _
    $region3: #{decoder_forward.1} parent=1 // pred_check_branch
      %23 = sbr.rel (0) target = $region5
    $region4: #{decoder_forward.1} parent=1 // pred_region
      _
    $region5: #{decoder_forward.1} parent=1 // pred_fallthru
      _
    // Predicated region
    $region6: #{decoder_forward.1} parent=1 // pred_check
      _
    $region7: #{decoder_forward.1} parent=1 // pred_check_branch
      %25 = sbr.rel (0) target = $region9
    $region8: #{decoder_forward.1} parent=1 // pred_region
      _
    $region9: #{decoder_forward.1} parent=1 // pred_fallthru
      _
    // Predicated region
    $region10: #{decoder_forward.1} parent=1 // pred_check
      _
    $region11: #{decoder_forward.1} parent=1 // pred_check_branch
      %27 = sbr.rel (0) target = $region13
    $region12: #{decoder_forward.1} parent=1 // pred_region
      %s29 = ssub.s32 256, 256
      %30 = vsyncadd [#allocation3], %s29
      %s31 = sshll.u32 [#allocation2], 4
      %s32 = int_to_ptr.vmem [resolvable:$true] %s31
      %37 = dma.hbm_to_vmem [thread:$0]  %s2, 256, %s32, [#allocation3], 128, 128, 8
    $region13: #{decoder_forward.1} parent=1 // pred_fallthru
      _
    // Predicated region
    $region14: #{decoder_forward.1} parent=1 // pred_check
      _
    $region15: #{decoder_forward.1} parent=1 // pred_check_branch
      %39 = sbr.rel (0) target = $region17
    $region16: #{decoder_forward.1} parent=1 // pred_region
      %s41 = ssub.s32 256, 256
      %42 = vsyncadd [#allocation6], %s41
      %s43 = sshll.u32 [#allocation5], 4
      %s44 = int_to_ptr.vmem [resolvable:$true] %s43
      %49 = dma.hbm_to_vmem [thread:$0]  %s3, 256, %s44, [#allocation6], 128, 128, 8
    $region17: #{decoder_forward.1} parent=1 // pred_fallthru
      _
    // Predicated region
    $region18: #{decoder_forward.1} parent=1 // pred_check
      _
    $region19: #{decoder_forward.1} parent=1 // pred_check_branch
      %51 = sbr.rel (0) target = $region21
    $region20: #{decoder_forward.1} parent=1 // pred_region
      _
    $region21: #{decoder_forward.1} parent=1 // pred_fallthru
      _
    // Predicated region
    $region22: #{decoder_forward.1} parent=1 // pred_check
      _
    $region23: #{decoder_forward.1} parent=1 // pred_check_branch
      %53 = sbr.rel (0) target = $region25
    $region24: #{decoder_forward.1} parent=1 // pred_region
      _
    $region25: #{decoder_forward.1} parent=1 // pred_fallthru
      _
    // Predicated region
    $region26: #{decoder_forward.1} parent=1 // pred_check
      _
    $region27: #{decoder_forward.1} parent=1 // pred_check_branch
      %55 = sbr.rel (0) target = $region29
    $region28: #{decoder_forward.1} parent=1 // pred_region
      _
    $region29: #{decoder_forward.1} parent=1 // pred_fallthru
      _
    // Predicated region
    $region30: #{decoder_forward.1} parent=1 // pred_check
      _
    $region31: #{decoder_forward.1} parent=1 // pred_check_branch
      %57 = sbr.rel (0) target = $region33
    $region32: #{decoder_forward.1} parent=1 // pred_region
      _
    $region33: #{decoder_forward.1} parent=1 // pred_fallthru
      _
    // Predicated region
    $region34: #{decoder_forward.1} parent=1 // pred_check
      _
    $region35: #{decoder_forward.1} parent=1 // pred_check_branch
      %59 = sbr.rel (0) target = $region37
    $region36: #{decoder_forward.1} parent=1 // pred_region
      _
    $region37: #{decoder_forward.1} parent=1 // pred_fallthru
      _
    // Predicated region
    $region38: #{decoder_forward.1} parent=1 // pred_check
      _
    $region39: #{decoder_forward.1} parent=1 // pred_check_branch
      %61 = sbr.rel (0) target = $region41
    $region40: #{decoder_forward.1} parent=1 // pred_region
      _
    $region41: #{decoder_forward.1} parent=1 // pred_fallthru
      _
    // Predicated region
    $region42: #{decoder_forward.1} parent=1 // pred_check
      _
    $region43: #{decoder_forward.1} parent=1 // pred_check_branch
      %63 = sbr.rel (0) target = $region45
    $region44: #{decoder_forward.1} parent=1 // pred_region
      %64 = dma.done [#allocation3], 256
    $region45: #{decoder_forward.1} parent=1 // pred_fallthru
      _
    // Predicated region
    $region46: #{decoder_forward.1} parent=1 // pred_check
      _
    $region47: #{decoder_forward.1} parent=1 // pred_check_branch
      %66 = sbr.rel (0) target = $region49
    $region48: #{decoder_forward.1} parent=1 // pred_region
      %67 = dma.done [#allocation6], 256
    $region49: #{decoder_forward.1} parent=1 // pred_fallthru
      _
    %v68 = vld [vmem:[%s0] sm:$0xff]
    %v69 = vlaneseq
    %v70 = vand.u32 %v69, 127
    %71 = vset.pattern.permute.xlu0 0
    %72 = vperm.xlu0 %71, %v68
    %v73 = vpop.permute.xlu0 %72
    %vm74 = vcmp.eq.s32.totalorder %v70, %v73
    %v75 = vsel %vm74, 1, 0
    %v76 = vcvt.s32.f32 %v75
    %v77 = vld [vmem:[%s1] sm:$0xff]
    %v78 = vld [vmem:[%s1 + $0x8] sm:$0xff]
    %v79 = vld [vmem:[%s1 + $0x10] sm:$0xff]
    %v80 = vld [vmem:[%s1 + $0x18] sm:$0xff]
    %v81 = vld [vmem:[%s1 + $0x20] sm:$0xff]
    %v82 = vld [vmem:[%s1 + $0x28] sm:$0xff]
    %v83 = vld [vmem:[%s1 + $0x30] sm:$0xff]
    %v84 = vld [vmem:[%s1 + $0x38] sm:$0xff]
    %v85 = vld [vmem:[%s1 + $0x40] sm:$0xff]
    %v86 = vld [vmem:[%s1 + $0x48] sm:$0xff]
    %v87 = vld [vmem:[%s1 + $0x50] sm:$0xff]
    %v88 = vld [vmem:[%s1 + $0x58] sm:$0xff]
    %v89 = vld [vmem:[%s1 + $0x60] sm:$0xff]
    %v90 = vld [vmem:[%s1 + $0x68] sm:$0xff]
    %v91 = vld [vmem:[%s1 + $0x70] sm:$0xff]
    %v92 = vld [vmem:[%s1 + $0x78] sm:$0xff]
    %93 = vmatprep.subr.mxu0 0.0
    %94 = vmatpush1.msra.mxu0 %v77
    %95 = vmatprep.subr.mxu0 0.0
    %96 = vmatpush1.msra.mxu0 %v78
    %97 = vmatprep.subr.mxu0 0.0
    %98 = vmatpush1.msra.mxu0 %v79
    %99 = vmatprep.subr.mxu0 0.0
    %100 = vmatpush1.msra.mxu0 %v80
    %101 = vmatprep.subr.mxu0 0.0
    %102 = vmatpush1.msra.mxu0 %v81
    %103 = vmatprep.subr.mxu0 0.0
    %104 = vmatpush1.msra.mxu0 %v82
    %105 = vmatprep.subr.mxu0 0.0
    %106 = vmatpush1.msra.mxu0 %v83
    %107 = vmatprep.subr.mxu0 0.0
    %108 = vmatpush1.msra.mxu0 %v84
    %109 = vmatprep.subr.mxu0 0.0
    %110 = vmatpush1.msra.mxu0 %v85
    %111 = vmatprep.subr.mxu0 0.0
    %112 = vmatpush1.msra.mxu0 %v86
    %113 = vmatprep.subr.mxu0 0.0
    %114 = vmatpush1.msra.mxu0 %v87
    %115 = vmatprep.subr.mxu0 0.0
    %116 = vmatpush1.msra.mxu0 %v88
    %117 = vmatprep.subr.mxu0 0.0
    %118 = vmatpush1.msra.mxu0 %v89
    %119 = vmatprep.subr.mxu0 0.0
    %120 = vmatpush1.msra.mxu0 %v90
    %121 = vmatprep.subr.mxu0 0.0
    %122 = vmatpush1.msra.mxu0 %v91
    %123 = vmatprep.subr.mxu0 0.0
    %124 = vmatpush1.msra.mxu0 %v92
    %125 = vmatprep.subr.mxu0 0.0
    %126 = vmatpush1.msra.mxu0 0.0
    %127 = vmatprep.subr.mxu0 0.0
    %128 = vmatpush1.msra.mxu0 0.0
    %129 = vmatprep.subr.mxu0 0.0
    %130 = vmatpush1.msra.mxu0 0.0
    %131 = vmatprep.subr.mxu0 0.0
    %132 = vmatpush1.msra.mxu0 0.0
    %133 = vmatprep.subr.mxu0 0.0
    %134 = vmatpush1.msra.mxu0 0.0
    %135 = vmatprep.subr.mxu0 0.0
    %136 = vmatpush1.msra.mxu0 0.0
    %137 = vmatprep.subr.mxu0 0.0
    %138 = vmatpush1.msra.mxu0 0.0
    %139 = vmatprep.subr.mxu0 0.0
    %140 = vmatpush1.msra.mxu0 0.0
    %141 = vmatprep.subr.mxu0 0.0
    %142 = vmatpush1.msra.mxu0 0.0
    %143 = vmatprep.subr.mxu0 0.0
    %144 = vmatpush1.msra.mxu0 0.0
    %145 = vmatprep.subr.mxu0 0.0
    %146 = vmatpush1.msra.mxu0 0.0
    %147 = vmatprep.subr.mxu0 0.0
    %148 = vmatpush1.msra.mxu0 0.0
    %149 = vmatprep.subr.mxu0 0.0
    %150 = vmatpush1.msra.mxu0 0.0
    %151 = vmatprep.subr.mxu0 0.0
    %152 = vmatpush1.msra.mxu0 0.0
    %153 = vmatprep.subr.mxu0 0.0
    %154 = vmatpush1.msra.mxu0 0.0
    %155 = vmatprep.subr.mxu0 0.0
    %156 = vmatpush1.msra.mxu0 0.0
    %157 = vmatprep.mubr.f32.mxu0 0.0
    %158 = vmatmul.mubr.f32.gmra.mrb[0].mxu0 %v76
    %v159 = vpop.f32.mrb[0].mxu0
    %v160 = vadd.f32 0.0, %v159
    %v161 = vpop.f32.mrb[0].mxu0
    %162 = vdwg.mxu0
    %v163 = vld [vmem:[#allocation2] sm:$0xff]
    %v164 = vld [vmem:[#allocation5] sm:$0xff]
    %166 = vrot.lane.b32.xlu0 %v163, 32
    %v167 = vpop.permute.xlu0 %166
    %vm169 = vcmask 261120
    %v170 = vsel %vm169, %v160, %v167
    %v171 = vld [vmem:[%s4] sm:$0xff]
    %v172 = vld [vmem:[%s4 + $0x8] sm:$0xff]
    %v173 = vld [vmem:[%s4 + $0x10] sm:$0xff]
    %v174 = vld [vmem:[%s4 + $0x18] sm:$0xff]
    %v175 = vld [vmem:[%s4 + $0x20] sm:$0xff]
    %v176 = vld [vmem:[%s4 + $0x28] sm:$0xff]
    %v177 = vld [vmem:[%s4 + $0x30] sm:$0xff]
    %v178 = vld [vmem:[%s4 + $0x38] sm:$0xff]
    %v179 = vld [vmem:[%s5] sm:$0x1]
    %v181 = vlaneseq
    %v182 = vshrl.u32 %v181, 7
    %v183 = vsub.s32 0, %v182
    %v184 = vrot.slane %v179, %v183
    %vm186 = vcmask 523264
    %v188 = vsel %vm186, %v170, 0
    %190 = vmatprep.subr.mxu0 0.0
    %191 = vmatpush1.msra.mxu0 %v171
    %192 = vmatprep.subr.mxu0 0.0
    %193 = vmatpush1.msra.mxu0 %v172
    %194 = vmatprep.subr.mxu0 0.0
    %195 = vmatpush1.msra.mxu0 %v173
    %196 = vmatprep.subr.mxu0 0.0
    %197 = vmatpush1.msra.mxu0 %v174
    %198 = vmatprep.subr.mxu0 0.0
    %199 = vmatpush1.msra.mxu0 %v175
    %200 = vmatprep.subr.mxu0 0.0
    %201 = vmatpush1.msra.mxu0 %v176
    %202 = vmatprep.subr.mxu0 0.0
    %203 = vmatpush1.msra.mxu0 %v177
    %204 = vmatprep.subr.mxu0 0.0
    %205 = vmatpush1.msra.mxu0 %v178
    %206 = vmatprep.subr.mxu0 0.0
    %207 = vmatpush1.msra.mxu0 0.0
    %208 = vmatprep.subr.mxu0 0.0
    %209 = vmatpush1.msra.mxu0 0.0
    %210 = vmatprep.subr.mxu0 0.0
    %211 = vmatpush1.msra.mxu0 0.0
    %212 = vmatprep.subr.mxu0 0.0
    %213 = vmatpush1.msra.mxu0 0.0
    %214 = vmatprep.subr.mxu0 0.0
    %215 = vmatpush1.msra.mxu0 0.0
    %216 = vmatprep.subr.mxu0 0.0
    %217 = vmatpush1.msra.mxu0 0.0
    %218 = vmatprep.subr.mxu0 0.0
    %219 = vmatpush1.msra.mxu0 0.0
    %220 = vmatprep.subr.mxu0 0.0
    %221 = vmatpush1.msra.mxu0 0.0
    %222 = vmatprep.subr.mxu0 0.0
    %223 = vmatpush1.msra.mxu0 0.0
    %224 = vmatprep.subr.mxu0 0.0
    %225 = vmatpush1.msra.mxu0 0.0
    %226 = vmatprep.subr.mxu0 0.0
    %227 = vmatpush1.msra.mxu0 0.0
    %228 = vmatprep.subr.mxu0 0.0
    %229 = vmatpush1.msra.mxu0 0.0
    %230 = vmatprep.subr.mxu0 0.0
    %231 = vmatpush1.msra.mxu0 0.0
    %232 = vmatprep.subr.mxu0 0.0
    %233 = vmatpush1.msra.mxu0 0.0
    %234 = vmatprep.subr.mxu0 0.0
    %235 = vmatpush1.msra.mxu0 0.0
    %236 = vmatprep.subr.mxu0 0.0
    %237 = vmatpush1.msra.mxu0 0.0
    %238 = vmatprep.subr.mxu0 0.0
    %239 = vmatpush1.msra.mxu0 0.0
    %240 = vmatprep.subr.mxu0 0.0
    %241 = vmatpush1.msra.mxu0 0.0
    %242 = vmatprep.subr.mxu0 0.0
    %243 = vmatpush1.msra.mxu0 0.0
    %244 = vmatprep.subr.mxu0 0.0
    %245 = vmatpush1.msra.mxu0 0.0
    %246 = vmatprep.subr.mxu0 0.0
    %247 = vmatpush1.msra.mxu0 0.0
    %248 = vmatprep.subr.mxu0 0.0
    %249 = vmatpush1.msra.mxu0 0.0
    %250 = vmatprep.subr.mxu0 0.0
    %251 = vmatpush1.msra.mxu0 0.0
    %252 = vmatprep.subr.mxu0 0.0
    %253 = vmatpush1.msra.mxu0 0.0
    %254 = vmatprep.mubr.f32.mxu0 0.0
    %255 = vmatmul.mubr.f32.gmra.mrb[0].mxu0 %v188
    %v256 = vpop.f32.mrb[0].mxu0
    %v257 = vadd.f32 %v184, %v256
    %v258 = vpop.f32.mrb[0].mxu0
    %259 = vdwg.mxu0
    %v260 = vxor.u32 %v257, 2147483648
    %v261 = vmul.f32 %v260, 1.442695
    %v262 = vpow.pop %v261
    %v263 = vadd.f32 %v262, 1.0
    %v264 = vrcp.pop %v263
    %v265 = vmul.f32 1.0, %v264
    %v266 = vtanh.pop %v257
    %268 = vrot.lane.b32.xlu0 %v164, 32
    %v269 = vpop.permute.xlu0 %268
    %v271 = vmul.f32 %v265, %v269
    %273 = vrot.lane.b32.xlu0 %v266, 64
    %v274 = vpop.permute.xlu0 %273
    %v276 = vmul.f32 %v265, %v274
    %278 = vrot.lane.b32.xlu0 %v276, 32
    %v279 = vpop.permute.xlu0 %278
    %v281 = vadd.f32 %v271, %v279
    %v282 = vtanh.pop %v281
    %284 = vrot.lane.b32.xlu0 %v282, 64
    %v285 = vpop.permute.xlu0 %284
    %v287 = vmul.f32 %v265, %v285
    %289 = vrot.lane.b32.xlu0 %v287, 32
    %v290 = vpop.permute.xlu0 %289
    %292 = vst.msk [vmem:[#allocation8] sm:$0xff] %vm169, %v290
    %294 = vrot.lane.b32.xlu0 %v281, 96
    %v295 = vpop.permute.xlu0 %294
    %297 = vst.msk [vmem:[#allocation10] sm:$0xff] %vm169, %v295
    %s298 = scalar_lea.vmem [#allocation2], 8
    %v299 = vld [vmem:[%s298] sm:$0xff]
    %s300 = scalar_lea.vmem [#allocation5], 8
    %v301 = vld [vmem:[%s300] sm:$0xff]
    %303 = vrot.lane.b32.xlu0 %v299, 32
    %v304 = vpop.permute.xlu0 %303
    %v306 = vsel %vm169, %v290, %v304
    %v307 = vld [vmem:[%s6] sm:$0xff]
    %v308 = vld [vmem:[%s6 + $0x8] sm:$0xff]
    %v309 = vld [vmem:[%s6 + $0x10] sm:$0xff]
    %v310 = vld [vmem:[%s6 + $0x18] sm:$0xff]
    %v311 = vld [vmem:[%s6 + $0x20] sm:$0xff]
    %v312 = vld [vmem:[%s6 + $0x28] sm:$0xff]
    %v313 = vld [vmem:[%s6 + $0x30] sm:$0xff]
    %v314 = vld [vmem:[%s6 + $0x38] sm:$0xff]
    %v315 = vld [vmem:[%s7] sm:$0x1]
    %v317 = vlaneseq
    %v318 = vshrl.u32 %v317, 7
    %v319 = vsub.s32 0, %v318
    %v320 = vrot.slane %v315, %v319
    %v323 = vsel %vm186, %v306, 0
    %325 = vmatprep.subr.mxu0 0.0
    %326 = vmatpush1.msra.mxu0 %v307
    %327 = vmatprep.subr.mxu0 0.0
    %328 = vmatpush1.msra.mxu0 %v308
    %329 = vmatprep.subr.mxu0 0.0
    %330 = vmatpush1.msra.mxu0 %v309
    %331 = vmatprep.subr.mxu0 0.0
    %332 = vmatpush1.msra.mxu0 %v310
    %333 = vmatprep.subr.mxu0 0.0
    %334 = vmatpush1.msra.mxu0 %v311
    %335 = vmatprep.subr.mxu0 0.0
    %336 = vmatpush1.msra.mxu0 %v312
    %337 = vmatprep.subr.mxu0 0.0
    %338 = vmatpush1.msra.mxu0 %v313
    %339 = vmatprep.subr.mxu0 0.0
    %340 = vmatpush1.msra.mxu0 %v314
    %341 = vmatprep.subr.mxu0 0.0
    %342 = vmatpush1.msra.mxu0 0.0
    %343 = vmatprep.subr.mxu0 0.0
    %344 = vmatpush1.msra.mxu0 0.0
    %345 = vmatprep.subr.mxu0 0.0
    %346 = vmatpush1.msra.mxu0 0.0
    %347 = vmatprep.subr.mxu0 0.0
    %348 = vmatpush1.msra.mxu0 0.0
    %349 = vmatprep.subr.mxu0 0.0
    %350 = vmatpush1.msra.mxu0 0.0
    %351 = vmatprep.subr.mxu0 0.0
    %352 = vmatpush1.msra.mxu0 0.0
    %353 = vmatprep.subr.mxu0 0.0
    %354 = vmatpush1.msra.mxu0 0.0
    %355 = vmatprep.subr.mxu0 0.0
    %356 = vmatpush1.msra.mxu0 0.0
    %357 = vmatprep.subr.mxu0 0.0
    %358 = vmatpush1.msra.mxu0 0.0
    %359 = vmatprep.subr.mxu0 0.0
    %360 = vmatpush1.msra.mxu0 0.0
    %361 = vmatprep.subr.mxu0 0.0
    %362 = vmatpush1.msra.mxu0 0.0
    %363 = vmatprep.subr.mxu0 0.0
    %364 = vmatpush1.msra.mxu0 0.0
    %365 = vmatprep.subr.mxu0 0.0
    %366 = vmatpush1.msra.mxu0 0.0
    %367 = vmatprep.subr.mxu0 0.0
    %368 = vmatpush1.msra.mxu0 0.0
    %369 = vmatprep.subr.mxu0 0.0
    %370 = vmatpush1.msra.mxu0 0.0
    %371 = vmatprep.subr.mxu0 0.0
    %372 = vmatpush1.msra.mxu0 0.0
    %373 = vmatprep.subr.mxu0 0.0
    %374 = vmatpush1.msra.mxu0 0.0
    %375 = vmatprep.subr.mxu0 0.0
    %376 = vmatpush1.msra.mxu0 0.0
    %377 = vmatprep.subr.mxu0 0.0
    %378 = vmatpush1.msra.mxu0 0.0
    %379 = vmatprep.subr.mxu0 0.0
    %380 = vmatpush1.msra.mxu0 0.0
    %381 = vmatprep.subr.mxu0 0.0
    %382 = vmatpush1.msra.mxu0 0.0
    %383 = vmatprep.subr.mxu0 0.0
    %384 = vmatpush1.msra.mxu0 0.0
    %385 = vmatprep.subr.mxu0 0.0
    %386 = vmatpush1.msra.mxu0 0.0
    %387 = vmatprep.subr.mxu0 0.0
    %388 = vmatpush1.msra.mxu0 0.0
    %389 = vmatprep.mubr.f32.mxu0 0.0
    %390 = vmatmul.mubr.f32.gmra.mrb[0].mxu0 %v323
    %v391 = vpop.f32.mrb[0].mxu0
    %v392 = vadd.f32 %v320, %v391
    %v393 = vpop.f32.mrb[0].mxu0
    %394 = vdwg.mxu0
    %v395 = vxor.u32 %v392, 2147483648
    %v396 = vmul.f32 %v395, 1.442695
    %v397 = vpow.pop %v396
    %v398 = vadd.f32 %v397, 1.0
    %v399 = vrcp.pop %v398
    %v400 = vmul.f32 1.0, %v399
    %v401 = vtanh.pop %v392
    %403 = vrot.lane.b32.xlu0 %v301, 32
    %v404 = vpop.permute.xlu0 %403
    %v406 = vmul.f32 %v400, %v404
    %408 = vrot.lane.b32.xlu0 %v401, 64
    %v409 = vpop.permute.xlu0 %408
    %v411 = vmul.f32 %v400, %v409
    %413 = vrot.lane.b32.xlu0 %v411, 32
    %v414 = vpop.permute.xlu0 %413
    %v416 = vadd.f32 %v406, %v414
    %v417 = vtanh.pop %v416
    %419 = vrot.lane.b32.xlu0 %v417, 64
    %v420 = vpop.permute.xlu0 %419
    %v422 = vmul.f32 %v400, %v420
    %424 = vrot.lane.b32.xlu0 %v422, 32
    %v425 = vpop.permute.xlu0 %424
    %s427 = scalar_lea.vmem [#allocation8], 8
    %428 = vst.msk [vmem:[%s427] sm:$0xff] %vm169, %v425
    %430 = vrot.lane.b32.xlu0 %v416, 96
    %v431 = vpop.permute.xlu0 %430
    %s433 = scalar_lea.vmem [#allocation10], 8
    %434 = vst.msk [vmem:[%s433] sm:$0xff] %vm169, %v431
    %v435 = vld [vmem:[%s8] sm:$0xff]
    %v436 = vld [vmem:[%s8 + $0x8] sm:$0xff]
    %v437 = vld [vmem:[%s8 + $0x10] sm:$0xff]
    %v438 = vld [vmem:[%s8 + $0x18] sm:$0xff]
    %v439 = vld [vmem:[%s9] sm:$0x1]
    %v441 = vlaneseq
    %v442 = vshrl.u32 %v441, 7
    %v443 = vsub.s32 0, %v442
    %v444 = vrot.slane %v439, %v443
    %v446 = vsel %vm169, %v425, 0
    %448 = vmatprep.subr.mxu0 0.0
    %449 = vmatpush1.msra.mxu0 %v435
    %450 = vmatprep.subr.mxu0 0.0
    %451 = vmatpush1.msra.mxu0 %v436
    %452 = vmatprep.subr.mxu0 0.0
    %453 = vmatpush1.msra.mxu0 %v437
    %454 = vmatprep.subr.mxu0 0.0
    %455 = vmatpush1.msra.mxu0 %v438
    %456 = vmatprep.subr.mxu0 0.0
    %457 = vmatpush1.msra.mxu0 0.0
    %458 = vmatprep.subr.mxu0 0.0
    %459 = vmatpush1.msra.mxu0 0.0
    %460 = vmatprep.subr.mxu0 0.0
    %461 = vmatpush1.msra.mxu0 0.0
    %462 = vmatprep.subr.mxu0 0.0
    %463 = vmatpush1.msra.mxu0 0.0
    %464 = vmatprep.subr.mxu0 0.0
    %465 = vmatpush1.msra.mxu0 0.0
    %466 = vmatprep.subr.mxu0 0.0
    %467 = vmatpush1.msra.mxu0 0.0
    %468 = vmatprep.subr.mxu0 0.0
    %469 = vmatpush1.msra.mxu0 0.0
    %470 = vmatprep.subr.mxu0 0.0
    %471 = vmatpush1.msra.mxu0 0.0
    %472 = vmatprep.subr.mxu0 0.0
    %473 = vmatpush1.msra.mxu0 0.0
    %474 = vmatprep.subr.mxu0 0.0
    %475 = vmatpush1.msra.mxu0 0.0
    %476 = vmatprep.subr.mxu0 0.0
    %477 = vmatpush1.msra.mxu0 0.0
    %478 = vmatprep.subr.mxu0 0.0
    %479 = vmatpush1.msra.mxu0 0.0
    %480 = vmatprep.subr.mxu0 0.0
    %481 = vmatpush1.msra.mxu0 0.0
    %482 = vmatprep.subr.mxu0 0.0
    %483 = vmatpush1.msra.mxu0 0.0
    %484 = vmatprep.subr.mxu0 0.0
    %485 = vmatpush1.msra.mxu0 0.0
    %486 = vmatprep.subr.mxu0 0.0
    %487 = vmatpush1.msra.mxu0 0.0
    %488 = vmatprep.subr.mxu0 0.0
    %489 = vmatpush1.msra.mxu0 0.0
    %490 = vmatprep.subr.mxu0 0.0
    %491 = vmatpush1.msra.mxu0 0.0
    %492 = vmatprep.subr.mxu0 0.0
    %493 = vmatpush1.msra.mxu0 0.0
    %494 = vmatprep.subr.mxu0 0.0
    %495 = vmatpush1.msra.mxu0 0.0
    %496 = vmatprep.subr.mxu0 0.0
    %497 = vmatpush1.msra.mxu0 0.0
    %498 = vmatprep.subr.mxu0 0.0
    %499 = vmatpush1.msra.mxu0 0.0
    %500 = vmatprep.subr.mxu0 0.0
    %501 = vmatpush1.msra.mxu0 0.0
    %502 = vmatprep.subr.mxu0 0.0
    %503 = vmatpush1.msra.mxu0 0.0
    %504 = vmatprep.subr.mxu0 0.0
    %505 = vmatpush1.msra.mxu0 0.0
    %506 = vmatprep.subr.mxu0 0.0
    %507 = vmatpush1.msra.mxu0 0.0
    %508 = vmatprep.subr.mxu0 0.0
    %509 = vmatpush1.msra.mxu0 0.0
    %510 = vmatprep.subr.mxu0 0.0
    %511 = vmatpush1.msra.mxu0 0.0
    %512 = vmatprep.mubr.f32.mxu0 0.0
    %513 = vmatmul.mubr.f32.gmra.mrb[0].mxu0 %v446
    %v514 = vpop.f32.mrb[0].mxu0
    %v515 = vadd.f32 %v444, %v514
    %v516 = vpop.f32.mrb[0].mxu0
    %517 = vdwg.mxu0
    %518 = vst [vmem:[#allocation7] sm:$0xff] %v515
    // Predicated region
    $region50: #{decoder_forward.1} parent=1 // pred_check
      _
    $region51: #{decoder_forward.1} parent=1 // pred_check_branch
      %520 = sbr.rel (0) target = $region53
    $region52: #{decoder_forward.1} parent=1 // pred_region
      %s522 = ssub.s32 128, 128
      %523 = vsyncadd [#allocation4], %s522
      %s525 = sshll.u32 [#allocation7], 4
      %s526 = int_to_ptr.vmem [resolvable:$true] %s525
      %528 = dma.vmem_to_hbm [thread:$0]  %s526, 128, %s10, [#allocation4]
    $region53: #{decoder_forward.1} parent=1 // pred_fallthru
      _
    // Predicated region
    $region54: #{decoder_forward.1} parent=1 // pred_check
      _
    $region55: #{decoder_forward.1} parent=1 // pred_check_branch
      %530 = sbr.rel (0) target = $region57
    $region56: #{decoder_forward.1} parent=1 // pred_region
      %s532 = ssub.s32 256, 256
      %533 = vsyncadd [#allocation9], %s532
      %s534 = sshll.u32 [#allocation8], 4
      %s535 = int_to_ptr.vmem [resolvable:$true] %s534
      %540 = dma.vmem_to_hbm [thread:$0]  %s535, 256, %s11, [#allocation9], 128, 128, 8
    $region57: #{decoder_forward.1} parent=1 // pred_fallthru
      _
    // Predicated region
    $region58: #{decoder_forward.1} parent=1 // pred_check
      _
    $region59: #{decoder_forward.1} parent=1 // pred_check_branch
      %542 = sbr.rel (0) target = $region61
    $region60: #{decoder_forward.1} parent=1 // pred_region
      %s544 = ssub.s32 256, 256
      %545 = vsyncadd [#allocation9], %s544
      %s546 = sshll.u32 [#allocation10], 4
      %s547 = int_to_ptr.vmem [resolvable:$true] %s546
      %552 = dma.vmem_to_hbm [thread:$0]  %s547, 256, %s12, [#allocation9], 128, 128, 8
    $region61: #{decoder_forward.1} parent=1 // pred_fallthru
      _
    // Predicated region
    $region62: #{decoder_forward.1} parent=1 // pred_check
      _
    $region63: #{decoder_forward.1} parent=1 // pred_check_branch
      %554 = sbr.rel (0) target = $region65
    $region64: #{decoder_forward.1} parent=1 // pred_region
      %555 = dma.done [#allocation4], 128
    $region65: #{decoder_forward.1} parent=1 // pred_fallthru
      _
    // Predicated region
    $region66: #{decoder_forward.1} parent=1 // pred_check
      _
    $region67: #{decoder_forward.1} parent=1 // pred_check_branch
      %557 = sbr.rel (0) target = $region69
    $region68: #{decoder_forward.1} parent=1 // pred_region
      %558 = dma.done [#allocation9], 256
    $region69: #{decoder_forward.1} parent=1 // pred_fallthru
      _
    // Predicated region
    $region70: #{decoder_forward.1} parent=1 // pred_check
      _
    $region71: #{decoder_forward.1} parent=1 // pred_check_branch
      %560 = sbr.rel (0) target = $region73
    $region72: #{decoder_forward.1} parent=1 // pred_region
      %561 = dma.done [#allocation9], 256
    $region73: #{decoder_forward.1} parent=1 // pred_fallthru
      _
    %562 = vsyncpa [#allocation3], 1
    %563 = vsyncpa [#allocation6], 1
    %564 = vsyncpa [#allocation4], 1
    %565 = vsyncpa [#allocation9], 1

</llo_original>
